<compile_context>
chip_gen: v6e
topology: v6e:2x2x1
jax: 0.10.0
libtpu: 0.0.40
codegen_flags: <defaults>
</compile_context>

<pallas_src>
import jax
import jax.numpy as jnp
from jax.experimental import pallas as pl
from jax.experimental.pallas import tpu as pltpu


def _round_up(x, m):
    return (x + m - 1) // m * m


def _make_baseconv_kernel(B, L, Cin, C1, K1, C2, K2, mxu_dtype,
                          off1, Lp1, off2, Lp2):
    """Fused conv->BN->LeakyReLU->conv->BN->LeakyReLU kernel (single block)."""
    P1 = (K1 - 1) // 2
    P2 = (K2 - 1) // 2
    base1 = off1 - P1           # tap-sum row offset inside the padded scratch
    base2 = off2 - P2
    eps = 1e-5
    slope = 0.01
    inv_n = 1.0 / float(B * L)

    def kernel(x_ref, w1f_ref, g1_ref, be1_ref, w2f_ref, g2_ref, be2_ref,
               out_ref, xpad_ref, h1pad_ref):
        # ---- stage x channels-last into pre-zeroed, padded VMEM scratch ------
        # Per-batch 2-D XLU transpose; the cast to the MXU dtype happens here,
        # so HBM only carries the original f32 input once.
        xpad_ref[...] = jnp.zeros_like(xpad_ref)
        for b in range(B):
            xpad_ref[b, off1:off1 + L, :] = x_ref[b].T.astype(mxu_dtype)

        # ---- conv1: ONE fused matmul over all K1 taps ------------------------
        z1 = jnp.dot(xpad_ref[...].reshape(B * Lp1, Cin), w1f_ref[...],
                     preferred_element_type=jnp.float32).reshape(B, Lp1, K1 * C1)
        y1 = z1[:, base1:base1 + L, 0:C1]
        for k in range(1, K1):
            y1 = y1 + z1[:, base1 + k:base1 + k + L, k * C1:(k + 1) * C1]
        # Conv bias omitted: cancelled exactly by BN's batch-mean subtraction.

        # ---- BN1 (training-mode batch stats, single pass) + LeakyReLU --------
        mean1 = jnp.sum(y1, axis=(0, 1), keepdims=True) * inv_n
        var1 = jnp.sum(y1 * y1, axis=(0, 1), keepdims=True) * inv_n - mean1 * mean1
        h1 = (y1 - mean1) * (jax.lax.rsqrt(var1 + eps) * g1_ref[...]) + be1_ref[...]
        h1 = jnp.where(h1 >= 0, h1, slope * h1)

        # ---- conv2: pad via pre-zeroed scratch, ONE fused matmul -------------
        h1pad_ref[...] = jnp.zeros_like(h1pad_ref)
        h1pad_ref[:, off2:off2 + L, :] = h1.astype(mxu_dtype)
        z2 = jnp.dot(h1pad_ref[...].reshape(B * Lp2, C1), w2f_ref[...],
                     preferred_element_type=jnp.float32).reshape(B, Lp2, K2 * C2)
        y2 = z2[:, base2:base2 + L, 0:C2]
        for k in range(1, K2):
            y2 = y2 + z2[:, base2 + k:base2 + k + L, k * C2:(k + 1) * C2]

        # ---- BN2 + LeakyReLU, lane-dense (B, C2, L) store --------------------
        mean2 = jnp.sum(y2, axis=(0, 1), keepdims=True) * inv_n
        var2 = jnp.sum(y2 * y2, axis=(0, 1), keepdims=True) * inv_n - mean2 * mean2
        h2 = (y2 - mean2) * (jax.lax.rsqrt(var2 + eps) * g2_ref[...]) + be2_ref[...]
        h2 = jnp.where(h2 >= 0, h2, slope * h2)
        for b in range(B):
            out_ref[b] = h2[b].T                      # (C2, L): L on the lane dim

    return kernel


def prepare_baseconv_params(w1, b1, w2, b2, g1, be1, g2, be2,
                            mxu_dtype=jnp.bfloat16):
    """One-time parameter prep: per-tap transposes fused into wide RHS matrices.

    w1: (C1, Cin, K1), w2: (C2, C1, K2) -- PyTorch Conv1d weight layout.
    b1/b2 are accepted for API parity but intentionally dropped: training-mode
    BatchNorm's batch-mean subtraction cancels per-channel conv biases exactly.
    """
    C1, _, K1 = w1.shape
    C2, _, K2 = w2.shape
    del b1, b2
    # Fused RHS: column block k holds W[:, :, k].T  -> shape (Cin, K*Cout).
    w1f = jnp.concatenate([w1[:, :, k].T for k in range(K1)], axis=1).astype(mxu_dtype)
    w2f = jnp.concatenate([w2[:, :, k].T for k in range(K2)], axis=1).astype(mxu_dtype)
    return dict(
        w1f=w1f,
        g1=g1.reshape(1, C1).astype(jnp.float32),
        be1=be1.reshape(1, C1).astype(jnp.float32),
        w2f=w2f,
        g2=g2.reshape(1, C2).astype(jnp.float32),
        be2=be2.reshape(1, C2).astype(jnp.float32),
    )


@jax.jit
def baseconv_forward(x, params):
    """x: (B, eeg_channel, L) float32 -> (B, s_channel, L) float32."""
    B, Cin, L = x.shape
    w1f, w2f = params["w1f"], params["w2f"]
    C1 = params["g1"].shape[-1]
    C2 = params["g2"].shape[-1]
    K1 = w1f.shape[1] // C1
    K2 = w2f.shape[1] // C2
    P1, P2 = (K1 - 1) // 2, (K2 - 1) // 2
    mxu_dtype = w1f.dtype
    itemsize = jnp.dtype(mxu_dtype).itemsize

    # Sublane packing of the MXU dtype decides padded-length alignment so the
    # in-kernel (B, Lp, C) -> (B*Lp, C) reshapes are free re-views and the
    # packed (bf16) scratch stores stay pack-aligned.
    pack = 4 // itemsize                      # 1 (f32) / 2 (bf16)
    sub = 8 * pack
    off1 = _round_up(P1, pack)
    off2 = _round_up(P2, pack)
    Lp1 = _round_up(off1 + L + (K1 - 1 - P1), sub)
    Lp2 = _round_up(off2 + L + (K2 - 1 - P2), sub)

    cost = pl.CostEstimate(
        flops=2 * B * (Lp1 * Cin * K1 * C1 + Lp2 * C1 * K2 * C2),
        transcendentals=C1 + C2,
        bytes_accessed=(B * Cin * L * 4 + B * C2 * L * 4
                        + (w1f.size + w2f.size) * itemsize + 2 * (C1 + C2) * 4),
    )

    kernel = _make_baseconv_kernel(B, L, Cin, C1, K1, C2, K2, mxu_dtype,
                                   off1, Lp1, off2, Lp2)
    vmem = pl.BlockSpec(memory_space=pltpu.MemorySpace.VMEM)
    return pl.pallas_call(
        kernel,
        out_shape=jax.ShapeDtypeStruct((B, C2, L), jnp.float32),
        in_specs=[vmem] * 7,
        out_specs=vmem,
        scratch_shapes=[pltpu.VMEM((B, Lp1, Cin), mxu_dtype),
                        pltpu.VMEM((B, Lp2, C1), mxu_dtype)],
        cost_estimate=cost,
    )(x.astype(jnp.float32), w1f,
      params["g1"], params["be1"], w2f, params["g2"], params["be2"])


def _reference(x, w1, b1, w2, b2, g1, be1, g2, be2):
    """Pure-JAX transcription of the PyTorch forward (NCW layout, f32)."""
    def conv1d(h, w, b):
        K = w.shape[2]
        P = (K - 1) // 2
        L = h.shape[2]
        hp = jnp.pad(h, ((0, 0), (0, 0), (P, P)))
        return sum(jnp.einsum('oi,bil->bol', w[:, :, k], hp[:, :, k:k + L])
                   for k in range(K)) + b[None, :, None]

    def bn(y, g, b):                                  # training-mode batch stats
        m = y.mean(axis=(0, 2), keepdims=True)
        v = y.var(axis=(0, 2), keepdims=True)         # biased variance
        return (y - m) / jnp.sqrt(v + 1e-5) * g[None, :, None] + b[None, :, None]

    leaky = lambda y: jnp.where(y >= 0, y, 0.01 * y)
    h1 = leaky(bn(conv1d(x, w1, b1), g1, be1))
    return leaky(bn(conv1d(h1, w2, b2), g2, be2))


if __name__ == "__main__":
    B = 2
    eeg_channel = 32     # Conv1 in-channels (module default)
    mid_channel = 24     # fixed by the module
    s_channel = 8        # module default
    L = 16               # sequence length

    key = jax.random.PRNGKey(0)
    kx, k1, k2, kb1, kb2 = jax.random.split(key, 5)

    # x: (B, eeg_channel, L) — the PyTorch module's input layout.
    x = jax.random.normal(kx, (B, eeg_channel, L), dtype=jnp.float32)

    # Conv1d weights in PyTorch layout (out, in, k); deterministic synthetic params.
    w1 = 0.2 * jax.random.normal(k1, (mid_channel, eeg_channel, 5), jnp.float32)
    b1 = 0.1 * jax.random.normal(kb1, (mid_channel,), jnp.float32)
    w2 = 0.2 * jax.random.normal(k2, (s_channel, mid_channel, 3), jnp.float32)
    b2 = 0.1 * jax.random.normal(kb2, (s_channel,), jnp.float32)
    g1 = jnp.ones((mid_channel,), jnp.float32)    # BatchNorm1d default affine init
    be1 = jnp.zeros((mid_channel,), jnp.float32)
    g2 = jnp.ones((s_channel,), jnp.float32)
    be2 = jnp.zeros((s_channel,), jnp.float32)

    ref = _reference(x, w1, b1, w2, b2, g1, be1, g2, be2)

    # f32-MXU path: tight numeric check against the reference.
    params_f32 = prepare_baseconv_params(w1, b1, w2, b2, g1, be1, g2, be2,
                                         mxu_dtype=jnp.float32)
    out_f32 = jax.block_until_ready(baseconv_forward(x, params_f32))
    assert out_f32.shape == (B, s_channel, L)
    assert jnp.allclose(out_f32, ref, rtol=1e-3, atol=1e-3), "f32 kernel mismatch"

    # bf16-MXU path (the production/default config): looser check — bf16 operands
    # with f32 accumulation introduce ~0.5-1% relative error on O(1) activations.
    params_bf16 = prepare_baseconv_params(w1, b1, w2, b2, g1, be1, g2, be2,
                                          mxu_dtype=jnp.bfloat16)
    out_bf16 = jax.block_until_ready(baseconv_forward(x, params_bf16))
    assert out_bf16.shape == (B, s_channel, L)
    assert jnp.allclose(out_bf16, ref, rtol=5e-2, atol=5e-2), "bf16 kernel mismatch"

    print("KERNEL_OK")
</pallas_src>

<mosaic_0001>
module attributes {stable_mosaic.version = 11 : i64} {
  func.func @kernel(%arg0: memref<2x32x16xf32, #tpu.memory_space<vmem>>, %arg1: memref<32x120xf32, #tpu.memory_space<vmem>>, %arg2: memref<1x24xf32, #tpu.memory_space<vmem>>, %arg3: memref<1x24xf32, #tpu.memory_space<vmem>>, %arg4: memref<24x24xf32, #tpu.memory_space<vmem>>, %arg5: memref<1x8xf32, #tpu.memory_space<vmem>>, %arg6: memref<1x8xf32, #tpu.memory_space<vmem>>, %arg7: memref<2x8x16xf32, #tpu.memory_space<vmem>>, %arg8: memref<2x24x32xf32, #tpu.memory_space<vmem>>, %arg9: memref<2x24x24xf32, #tpu.memory_space<vmem>>) attributes {dimension_semantics = [], scalar_prefetch = 0 : i64, scratch_operands = 2 : i64, tpu.core_type = #tpu.core_type<tc>} {
    %cst = arith.constant 0.000000e+00 : f32
    %0 = vector.broadcast %cst : f32 to vector<2x24x32xf32>
    %c0 = arith.constant 0 : index
    %c0_0 = arith.constant 0 : index
    %c0_1 = arith.constant 0 : index
    %1 = vector.load %arg8[%c0, %c0_0, %c0_1] : memref<2x24x32xf32, #tpu.memory_space<vmem>>, vector<2x24x32xf32>
    tpu.vector_store %arg8[%c0, %c0_0, %c0_1], %0 {strides = array<i32>} : memref<2x24x32xf32, #tpu.memory_space<vmem>>, vector<2x24x32xf32>,
    %c0_2 = arith.constant 0 : index
    %c0_3 = arith.constant 0 : index
    %c0_4 = arith.constant 0 : index
    %2 = vector.load %arg0[%c0_2, %c0_3, %c0_4] : memref<2x32x16xf32, #tpu.memory_space<vmem>>, vector<1x32x16xf32>
    %3 = vector.shape_cast %2 : vector<1x32x16xf32> to vector<32x16xf32>
    %4 = tpu.transpose %3, [1, 0] : vector<32x16xf32> -> vector<16x32xf32>
    %c0_5 = arith.constant 0 : index
    %c2 = arith.constant 2 : index
    %c0_6 = arith.constant 0 : index
    %5 = vector.load %arg8[%c0_5, %c2, %c0_6] : memref<2x24x32xf32, #tpu.memory_space<vmem>>, vector<1x16x32xf32>
    %6 = vector.shape_cast %5 : vector<1x16x32xf32> to vector<16x32xf32>
    %7 = vector.shape_cast %4 : vector<16x32xf32> to vector<1x16x32xf32>
    tpu.vector_store %arg8[%c0_5, %c2, %c0_6], %7 {strides = array<i32>} : memref<2x24x32xf32, #tpu.memory_space<vmem>>, vector<1x16x32xf32>,
    %c1 = arith.constant 1 : index
    %c0_7 = arith.constant 0 : index
    %c0_8 = arith.constant 0 : index
    %8 = vector.load %arg0[%c1, %c0_7, %c0_8] : memref<2x32x16xf32, #tpu.memory_space<vmem>>, vector<1x32x16xf32>
    %9 = vector.shape_cast %8 : vector<1x32x16xf32> to vector<32x16xf32>
    %10 = tpu.transpose %9, [1, 0] : vector<32x16xf32> -> vector<16x32xf32>
    %c1_9 = arith.constant 1 : index
    %c2_10 = arith.constant 2 : index
    %c0_11 = arith.constant 0 : index
    %11 = vector.load %arg8[%c1_9, %c2_10, %c0_11] : memref<2x24x32xf32, #tpu.memory_space<vmem>>, vector<1x16x32xf32>
    %12 = vector.shape_cast %11 : vector<1x16x32xf32> to vector<16x32xf32>
    %13 = vector.shape_cast %10 : vector<16x32xf32> to vector<1x16x32xf32>
    tpu.vector_store %arg8[%c1_9, %c2_10, %c0_11], %13 {strides = array<i32>} : memref<2x24x32xf32, #tpu.memory_space<vmem>>, vector<1x16x32xf32>,
    %c0_12 = arith.constant 0 : index
    %c0_13 = arith.constant 0 : index
    %c0_14 = arith.constant 0 : index
    %14 = vector.load %arg8[%c0_12, %c0_13, %c0_14] : memref<2x24x32xf32, #tpu.memory_space<vmem>>, vector<2x24x32xf32>
    %15 = vector.shape_cast %14 : vector<2x24x32xf32> to vector<48x32xf32>
    %c0_15 = arith.constant 0 : index
    %c0_16 = arith.constant 0 : index
    %16 = vector.load %arg1[%c0_15, %c0_16] : memref<32x120xf32, #tpu.memory_space<vmem>>, vector<32x120xf32>
    %cst_17 = arith.constant dense<0.000000e+00> : vector<48x120xf32>
    %17 = tpu.matmul %15, %16, %cst_17 {dimension_numbers = #tpu.dot_dimension_numbers<[1], [0], [0], [1], [0, 0, 1, 1], [], []>} : vector<48x32xf32>, vector<32x120xf32>, vector<48x120xf32> -> vector<48x120xf32>
    %18 = vector.shape_cast %17 : vector<48x120xf32> to vector<2x24x120xf32>
    %19 = vector.extract_strided_slice %18 {offsets = [0, 0, 0], sizes = [2, 16, 24], strides = [1, 1, 1]} : vector<2x24x120xf32> to vector<2x16x24xf32>
    %20 = vector.extract_strided_slice %18 {offsets = [0, 1, 24], sizes = [2, 16, 24], strides = [1, 1, 1]} : vector<2x24x120xf32> to vector<2x16x24xf32>
    %21 = arith.addf %19, %20 : vector<2x16x24xf32>
    %22 = vector.extract_strided_slice %18 {offsets = [0, 2, 48], sizes = [2, 16, 24], strides = [1, 1, 1]} : vector<2x24x120xf32> to vector<2x16x24xf32>
    %23 = arith.addf %21, %22 : vector<2x16x24xf32>
    %24 = vector.extract_strided_slice %18 {offsets = [0, 3, 72], sizes = [2, 16, 24], strides = [1, 1, 1]} : vector<2x24x120xf32> to vector<2x16x24xf32>
    %25 = arith.addf %23, %24 : vector<2x16x24xf32>
    %26 = vector.extract_strided_slice %18 {offsets = [0, 4, 96], sizes = [2, 16, 24], strides = [1, 1, 1]} : vector<2x24x120xf32> to vector<2x16x24xf32>
    %27 = arith.addf %25, %26 : vector<2x16x24xf32>
    %cst_18 = arith.constant dense<0.000000e+00> : vector<24xf32>
    %28 = vector.multi_reduction <add>, %27, %cst_18 [0, 1] : vector<2x16x24xf32> to vector<24xf32>
    %29 = vector.shape_cast %28 : vector<24xf32> to vector<1x1x24xf32>
    %cst_19 = arith.constant 3.125000e-02 : f32
    %30 = vector.broadcast %cst_19 : f32 to vector<1x1x24xf32>
    %31 = arith.mulf %29, %30 : vector<1x1x24xf32>
    %32 = arith.mulf %27, %27 : vector<2x16x24xf32>
    %cst_20 = arith.constant dense<0.000000e+00> : vector<24xf32>
    %33 = vector.multi_reduction <add>, %32, %cst_20 [0, 1] : vector<2x16x24xf32> to vector<24xf32>
    %34 = vector.shape_cast %33 : vector<24xf32> to vector<1x1x24xf32>
    %cst_21 = arith.constant 3.125000e-02 : f32
    %35 = vector.broadcast %cst_21 : f32 to vector<1x1x24xf32>
    %36 = arith.mulf %34, %35 : vector<1x1x24xf32>
    %37 = arith.mulf %31, %31 : vector<1x1x24xf32>
    %38 = arith.subf %36, %37 : vector<1x1x24xf32>
    %39 = vector.broadcast %31 : vector<1x1x24xf32> to vector<2x16x24xf32>
    %40 = arith.subf %27, %39 : vector<2x16x24xf32>
    %cst_22 = arith.constant 9.99999974E-6 : f32
    %41 = vector.broadcast %cst_22 : f32 to vector<1x1x24xf32>
    %42 = arith.addf %38, %41 : vector<1x1x24xf32>
    %43 = math.rsqrt %42 : vector<1x1x24xf32>
    %c0_23 = arith.constant 0 : index
    %c0_24 = arith.constant 0 : index
    %44 = vector.load %arg2[%c0_23, %c0_24] : memref<1x24xf32, #tpu.memory_space<vmem>>, vector<1x24xf32>
    %45 = vector.shape_cast %44 : vector<1x24xf32> to vector<1x1x24xf32>
    %46 = arith.mulf %43, %45 : vector<1x1x24xf32>
    %47 = vector.broadcast %46 : vector<1x1x24xf32> to vector<2x16x24xf32>
    %48 = arith.mulf %40, %47 : vector<2x16x24xf32>
    %c0_25 = arith.constant 0 : index
    %c0_26 = arith.constant 0 : index
    %49 = vector.load %arg3[%c0_25, %c0_26] : memref<1x24xf32, #tpu.memory_space<vmem>>, vector<1x24xf32>
    %50 = vector.shape_cast %49 : vector<1x24xf32> to vector<1x1x24xf32>
    %51 = vector.broadcast %50 : vector<1x1x24xf32> to vector<2x16x24xf32>
    %52 = arith.addf %48, %51 : vector<2x16x24xf32>
    %cst_27 = arith.constant 0.000000e+00 : f32
    %53 = vector.broadcast %cst_27 : f32 to vector<2x16x24xf32>
    %54 = arith.cmpf oge, %52, %53 : vector<2x16x24xf32>
    %cst_28 = arith.constant 0.00999999977 : f32
    %55 = vector.broadcast %cst_28 : f32 to vector<2x16x24xf32>
    %56 = arith.mulf %55, %52 : vector<2x16x24xf32>
    %57 = arith.select %54, %52, %56 : vector<2x16x24xi1>, vector<2x16x24xf32>
    %cst_29 = arith.constant 0.000000e+00 : f32
    %58 = vector.broadcast %cst_29 : f32 to vector<2x24x24xf32>
    %c0_30 = arith.constant 0 : index
    %c0_31 = arith.constant 0 : index
    %c0_32 = arith.constant 0 : index
    %59 = vector.load %arg9[%c0_30, %c0_31, %c0_32] : memref<2x24x24xf32, #tpu.memory_space<vmem>>, vector<2x24x24xf32>
    tpu.vector_store %arg9[%c0_30, %c0_31, %c0_32], %58 {strides = array<i32>} : memref<2x24x24xf32, #tpu.memory_space<vmem>>, vector<2x24x24xf32>,
    %c0_33 = arith.constant 0 : index
    %c1_34 = arith.constant 1 : index
    %c0_35 = arith.constant 0 : index
    %60 = vector.load %arg9[%c0_33, %c1_34, %c0_35] : memref<2x24x24xf32, #tpu.memory_space<vmem>>, vector<2x16x24xf32>
    tpu.vector_store %arg9[%c0_33, %c1_34, %c0_35], %57 {strides = array<i32>} : memref<2x24x24xf32, #tpu.memory_space<vmem>>, vector<2x16x24xf32>,
    %c0_36 = arith.constant 0 : index
    %c0_37 = arith.constant 0 : index
    %c0_38 = arith.constant 0 : index
    %61 = vector.load %arg9[%c0_36, %c0_37, %c0_38] : memref<2x24x24xf32, #tpu.memory_space<vmem>>, vector<2x24x24xf32>
    %62 = vector.shape_cast %61 : vector<2x24x24xf32> to vector<48x24xf32>
    %c0_39 = arith.constant 0 : index
    %c0_40 = arith.constant 0 : index
    %63 = vector.load %arg4[%c0_39, %c0_40] : memref<24x24xf32, #tpu.memory_space<vmem>>, vector<24x24xf32>
    %cst_41 = arith.constant dense<0.000000e+00> : vector<48x24xf32>
    %64 = tpu.matmul %62, %63, %cst_41 {dimension_numbers = #tpu.dot_dimension_numbers<[1], [0], [0], [1], [0, 0, 1, 1], [], []>} : vector<48x24xf32>, vector<24x24xf32>, vector<48x24xf32> -> vector<48x24xf32>
    %65 = vector.shape_cast %64 : vector<48x24xf32> to vector<2x24x24xf32>
    %66 = vector.extract_strided_slice %65 {offsets = [0, 0, 0], sizes = [2, 16, 8], strides = [1, 1, 1]} : vector<2x24x24xf32> to vector<2x16x8xf32>
    %67 = vector.extract_strided_slice %65 {offsets = [0, 1, 8], sizes = [2, 16, 8], strides = [1, 1, 1]} : vector<2x24x24xf32> to vector<2x16x8xf32>
    %68 = arith.addf %66, %67 : vector<2x16x8xf32>
    %69 = vector.extract_strided_slice %65 {offsets = [0, 2, 16], sizes = [2, 16, 8], strides = [1, 1, 1]} : vector<2x24x24xf32> to vector<2x16x8xf32>
    %70 = arith.addf %68, %69 : vector<2x16x8xf32>
    %cst_42 = arith.constant dense<0.000000e+00> : vector<8xf32>
    %71 = vector.multi_reduction <add>, %70, %cst_42 [0, 1] : vector<2x16x8xf32> to vector<8xf32>
    %72 = vector.shape_cast %71 : vector<8xf32> to vector<1x1x8xf32>
    %cst_43 = arith.constant 3.125000e-02 : f32
    %73 = vector.broadcast %cst_43 : f32 to vector<1x1x8xf32>
    %74 = arith.mulf %72, %73 : vector<1x1x8xf32>
    %75 = arith.mulf %70, %70 : vector<2x16x8xf32>
    %cst_44 = arith.constant dense<0.000000e+00> : vector<8xf32>
    %76 = vector.multi_reduction <add>, %75, %cst_44 [0, 1] : vector<2x16x8xf32> to vector<8xf32>
    %77 = vector.shape_cast %76 : vector<8xf32> to vector<1x1x8xf32>
    %cst_45 = arith.constant 3.125000e-02 : f32
    %78 = vector.broadcast %cst_45 : f32 to vector<1x1x8xf32>
    %79 = arith.mulf %77, %78 : vector<1x1x8xf32>
    %80 = arith.mulf %74, %74 : vector<1x1x8xf32>
    %81 = arith.subf %79, %80 : vector<1x1x8xf32>
    %82 = vector.broadcast %74 : vector<1x1x8xf32> to vector<2x16x8xf32>
    %83 = arith.subf %70, %82 : vector<2x16x8xf32>
    %cst_46 = arith.constant 9.99999974E-6 : f32
    %84 = vector.broadcast %cst_46 : f32 to vector<1x1x8xf32>
    %85 = arith.addf %81, %84 : vector<1x1x8xf32>
    %86 = math.rsqrt %85 : vector<1x1x8xf32>
    %c0_47 = arith.constant 0 : index
    %c0_48 = arith.constant 0 : index
    %87 = vector.load %arg5[%c0_47, %c0_48] : memref<1x8xf32, #tpu.memory_space<vmem>>, vector<1x8xf32>
    %88 = vector.shape_cast %87 : vector<1x8xf32> to vector<1x1x8xf32>
    %89 = arith.mulf %86, %88 : vector<1x1x8xf32>
    %90 = vector.broadcast %89 : vector<1x1x8xf32> to vector<2x16x8xf32>
    %91 = arith.mulf %83, %90 : vector<2x16x8xf32>
    %c0_49 = arith.constant 0 : index
    %c0_50 = arith.constant 0 : index
    %92 = vector.load %arg6[%c0_49, %c0_50] : memref<1x8xf32, #tpu.memory_space<vmem>>, vector<1x8xf32>
    %93 = vector.shape_cast %92 : vector<1x8xf32> to vector<1x1x8xf32>
    %94 = vector.broadcast %93 : vector<1x1x8xf32> to vector<2x16x8xf32>
    %95 = arith.addf %91, %94 : vector<2x16x8xf32>
    %cst_51 = arith.constant 0.000000e+00 : f32
    %96 = vector.broadcast %cst_51 : f32 to vector<2x16x8xf32>
    %97 = arith.cmpf oge, %95, %96 : vector<2x16x8xf32>
    %cst_52 = arith.constant 0.00999999977 : f32
    %98 = vector.broadcast %cst_52 : f32 to vector<2x16x8xf32>
    %99 = arith.mulf %98, %95 : vector<2x16x8xf32>
    %100 = arith.select %97, %95, %99 : vector<2x16x8xi1>, vector<2x16x8xf32>
    %101 = vector.extract_strided_slice %100 {offsets = [0, 0, 0], sizes = [1, 16, 8], strides = [1, 1, 1]} : vector<2x16x8xf32> to vector<1x16x8xf32>
    %102 = vector.shape_cast %101 : vector<1x16x8xf32> to vector<16x8xf32>
    %103 = tpu.transpose %102, [1, 0] : vector<16x8xf32> -> vector<8x16xf32>
    %c0_53 = arith.constant 0 : index
    %c0_54 = arith.constant 0 : index
    %c0_55 = arith.constant 0 : index
    %104 = vector.load %arg7[%c0_53, %c0_54, %c0_55] : memref<2x8x16xf32, #tpu.memory_space<vmem>>, vector<1x8x16xf32>
    %105 = vector.shape_cast %104 : vector<1x8x16xf32> to vector<8x16xf32>
    %106 = vector.shape_cast %103 : vector<8x16xf32> to vector<1x8x16xf32>
    tpu.vector_store %arg7[%c0_53, %c0_54, %c0_55], %106 {strides = array<i32>} : memref<2x8x16xf32, #tpu.memory_space<vmem>>, vector<1x8x16xf32>,
    %107 = vector.extract_strided_slice %100 {offsets = [1, 0, 0], sizes = [1, 16, 8], strides = [1, 1, 1]} : vector<2x16x8xf32> to vector<1x16x8xf32>
    %108 = vector.shape_cast %107 : vector<1x16x8xf32> to vector<16x8xf32>
    %109 = tpu.transpose %108, [1, 0] : vector<16x8xf32> -> vector<8x16xf32>
    %c1_56 = arith.constant 1 : index
    %c0_57 = arith.constant 0 : index
    %c0_58 = arith.constant 0 : index
    %110 = vector.load %arg7[%c1_56, %c0_57, %c0_58] : memref<2x8x16xf32, #tpu.memory_space<vmem>>, vector<1x8x16xf32>
    %111 = vector.shape_cast %110 : vector<1x8x16xf32> to vector<8x16xf32>
    %112 = vector.shape_cast %109 : vector<8x16xf32> to vector<1x8x16xf32>
    tpu.vector_store %arg7[%c1_56, %c0_57, %c0_58], %112 {strides = array<i32>} : memref<2x8x16xf32, #tpu.memory_space<vmem>>, vector<1x8x16xf32>,
    return
  }
}

</mosaic_0001>

<llo_original>
// kernel: baseconv_forward.1
$region0: #{baseconv_forward.1}
  #allocation0 [shape = 'u32[]', space=smem, size = 0x4, offset = 0x4, fixed_abs, tag = 'smem constant byte address 0x4 - core index']
  #allocation1 [shape = 'u32[144,128]{1,0:T(1,128)}', space=vmem, size = 0x12000, scoped, tag = 'internal scratch']
  #allocation2 [shape = 'f32[2,24,32]{2,1,0:T(8,128)}', space=vmem, size = 0x6000, scoped, tag = 'scratch operand']
  #allocation3 [shape = 'f32[2,24,24]{2,1,0:T(8,128)}', space=vmem, size = 0x6000, scoped, tag = 'scratch operand']
  %s0 = inlined_call_operand.vmem [shape: f32[2,32,16], index: 0, kind: input, shape index: {}]
  %s1 = inlined_call_operand.vmem [shape: f32[32,120], index: 1, kind: input, shape index: {}]
  %s2 = inlined_call_operand.vmem [shape: f32[1,24], index: 2, kind: input, shape index: {}]
  %s3 = inlined_call_operand.vmem [shape: f32[1,24], index: 3, kind: input, shape index: {}]
  %s4 = inlined_call_operand.vmem [shape: f32[24,24], index: 4, kind: input, shape index: {}]
  %s5 = inlined_call_operand.vmem [shape: f32[1,8], index: 5, kind: input, shape index: {}]
  %s6 = inlined_call_operand.vmem [shape: f32[1,8], index: 6, kind: input, shape index: {}]
  %s7 = inlined_call_operand.hbm [shape: f32[2,8,16], index: 7, kind: output, shape index: {}]
  %s8 = sld [smem:[#allocation0]]
  $region38: #{baseconv_forward.1} parent=0
    _
  %s10 = ssub.s32 1, %s8
  %s11 = scalar_select 0, %s10, %s8
  $region1: #{baseconv_forward.1} parent=0
    #allocation4 [shape = 'u8[8192]{0}', space=vmem, size = 0x2000, scoped, tag = 'output window, operand 0, single buffered']
    #allocation5 [shape = 's32[1]{0}', space=sflag, size = 0x4, scoped, tag = 'scoped memory for baseconv_forward.1']
    %12 = vsyncpa [#allocation5], 0
    // Predicated region
    $region2: #{baseconv_forward.1} parent=1 // pred_check
      _
    $region3: #{baseconv_forward.1} parent=1 // pred_check_branch
      %14 = sbr.rel (0) target = $region5
    $region4: #{baseconv_forward.1} parent=1 // pred_region
      _
    $region5: #{baseconv_forward.1} parent=1 // pred_fallthru
      _
    // Predicated region
    $region6: #{baseconv_forward.1} parent=1 // pred_check
      _
    $region7: #{baseconv_forward.1} parent=1 // pred_check_branch
      %16 = sbr.rel (0) target = $region9
    $region8: #{baseconv_forward.1} parent=1 // pred_region
      _
    $region9: #{baseconv_forward.1} parent=1 // pred_fallthru
      _
    // Predicated region
    $region10: #{baseconv_forward.1} parent=1 // pred_check
      _
    $region11: #{baseconv_forward.1} parent=1 // pred_check_branch
      %18 = sbr.rel (0) target = $region13
    $region12: #{baseconv_forward.1} parent=1 // pred_region
      _
    $region13: #{baseconv_forward.1} parent=1 // pred_fallthru
      _
    // Predicated region
    $region14: #{baseconv_forward.1} parent=1 // pred_check
      _
    $region15: #{baseconv_forward.1} parent=1 // pred_check_branch
      %20 = sbr.rel (0) target = $region17
    $region16: #{baseconv_forward.1} parent=1 // pred_region
      _
    $region17: #{baseconv_forward.1} parent=1 // pred_fallthru
      _
    // Predicated region
    $region18: #{baseconv_forward.1} parent=1 // pred_check
      _
    $region19: #{baseconv_forward.1} parent=1 // pred_check_branch
      %22 = sbr.rel (0) target = $region21
    $region20: #{baseconv_forward.1} parent=1 // pred_region
      _
    $region21: #{baseconv_forward.1} parent=1 // pred_fallthru
      _
    // Predicated region
    $region22: #{baseconv_forward.1} parent=1 // pred_check
      _
    $region23: #{baseconv_forward.1} parent=1 // pred_check_branch
      %24 = sbr.rel (0) target = $region25
    $region24: #{baseconv_forward.1} parent=1 // pred_region
      _
    $region25: #{baseconv_forward.1} parent=1 // pred_fallthru
      _
    // Predicated region
    $region26: #{baseconv_forward.1} parent=1 // pred_check
      _
    $region27: #{baseconv_forward.1} parent=1 // pred_check_branch
      %26 = sbr.rel (0) target = $region29
    $region28: #{baseconv_forward.1} parent=1 // pred_region
      _
    $region29: #{baseconv_forward.1} parent=1 // pred_fallthru
      _
    %vm27 = vcmask 261120
    %28 = vst.msk [vmem:[#allocation2] sm:$0xff] %vm27, 0.0
    %29 = vst.msk [vmem:[#allocation2 + $0x8] sm:$0xff] %vm27, 0.0
    %30 = vst.msk [vmem:[#allocation2 + $0x10] sm:$0xff] %vm27, 0.0
    %31 = vst.msk [vmem:[#allocation2 + $0x18] sm:$0xff] %vm27, 0.0
    %32 = vst.msk [vmem:[#allocation2 + $0x20] sm:$0xff] %vm27, 0.0
    %33 = vst.msk [vmem:[#allocation2 + $0x28] sm:$0xff] %vm27, 0.0
    %v34 = vld [vmem:[%s0] sm:$0xff]
    %v35 = vld [vmem:[%s0 + $0x8] sm:$0xff]
    %v36 = vld [vmem:[%s0 + $0x10] sm:$0xff]
    %v37 = vld [vmem:[%s0 + $0x18] sm:$0xff]
    %38 = vxpose.xlu0.b32.start [1/16] %v34, 128
    %39 = vxpose.xlu0.b32.cont [2/16] %v35, 128
    %40 = vxpose.xlu0.b32.cont [3/16] %v36, 128
    %41 = vxpose.xlu0.b32.cont [4/16] %v37, 128
    %42 = vxpose.xlu0.b32.cont [5/16] 0.0, 128
    %43 = vxpose.xlu0.b32.cont [6/16] 0.0, 128
    %44 = vxpose.xlu0.b32.cont [7/16] 0.0, 128
    %45 = vxpose.xlu0.b32.cont [8/16] 0.0, 128
    %46 = vxpose.xlu0.b32.cont [9/16] 0.0, 128
    %47 = vxpose.xlu0.b32.cont [10/16] 0.0, 128
    %48 = vxpose.xlu0.b32.cont [11/16] 0.0, 128
    %49 = vxpose.xlu0.b32.cont [12/16] 0.0, 128
    %50 = vxpose.xlu0.b32.cont [13/16] 0.0, 128
    %51 = vxpose.xlu0.b32.cont [14/16] 0.0, 128
    %52 = vxpose.xlu0.b32.cont [15/16] 0.0, 128
    %53 = vxpose.xlu0.b32.end [16/16] 0.0, 128
    %v54 = vpop.trf.xlu0
    %v55 = vpop.trf.xlu0
    %v56 = vpop.trf.xlu0
    %v57 = vpop.trf.xlu0
    %v58 = vpop.trf.xlu0
    %v59 = vpop.trf.xlu0
    %v60 = vpop.trf.xlu0
    %v61 = vpop.trf.xlu0
    %v62 = vpop.trf.xlu0
    %v63 = vpop.trf.xlu0
    %v64 = vpop.trf.xlu0
    %v65 = vpop.trf.xlu0
    %v66 = vpop.trf.xlu0
    %v67 = vpop.trf.xlu0
    %v68 = vpop.trf.xlu0
    %v69 = vpop.trf.xlu0
    %70 = vst.msk [vmem:[#allocation2 + $0x2] sm:$0xff] %vm27, %v54
    %71 = vst.msk [vmem:[#allocation2 + $0xa] sm:$0xff] %vm27, %v55
    %s72 = scalar_lea.vmem %s0, 32
    %v73 = vld [vmem:[%s72] sm:$0xff]
    %v74 = vld [vmem:[%s72 + $0x8] sm:$0xff]
    %v75 = vld [vmem:[%s72 + $0x10] sm:$0xff]
    %v76 = vld [vmem:[%s72 + $0x18] sm:$0xff]
    %77 = vxpose.xlu0.b32.start [1/16] %v73, 128
    %78 = vxpose.xlu0.b32.cont [2/16] %v74, 128
    %79 = vxpose.xlu0.b32.cont [3/16] %v75, 128
    %80 = vxpose.xlu0.b32.cont [4/16] %v76, 128
    %81 = vxpose.xlu0.b32.cont [5/16] 0.0, 128
    %82 = vxpose.xlu0.b32.cont [6/16] 0.0, 128
    %83 = vxpose.xlu0.b32.cont [7/16] 0.0, 128
    %84 = vxpose.xlu0.b32.cont [8/16] 0.0, 128
    %85 = vxpose.xlu0.b32.cont [9/16] 0.0, 128
    %86 = vxpose.xlu0.b32.cont [10/16] 0.0, 128
    %87 = vxpose.xlu0.b32.cont [11/16] 0.0, 128
    %88 = vxpose.xlu0.b32.cont [12/16] 0.0, 128
    %89 = vxpose.xlu0.b32.cont [13/16] 0.0, 128
    %90 = vxpose.xlu0.b32.cont [14/16] 0.0, 128
    %91 = vxpose.xlu0.b32.cont [15/16] 0.0, 128
    %92 = vxpose.xlu0.b32.end [16/16] 0.0, 128
    %v93 = vpop.trf.xlu0
    %v94 = vpop.trf.xlu0
    %v95 = vpop.trf.xlu0
    %v96 = vpop.trf.xlu0
    %v97 = vpop.trf.xlu0
    %v98 = vpop.trf.xlu0
    %v99 = vpop.trf.xlu0
    %v100 = vpop.trf.xlu0
    %v101 = vpop.trf.xlu0
    %v102 = vpop.trf.xlu0
    %v103 = vpop.trf.xlu0
    %v104 = vpop.trf.xlu0
    %v105 = vpop.trf.xlu0
    %v106 = vpop.trf.xlu0
    %v107 = vpop.trf.xlu0
    %v108 = vpop.trf.xlu0
    %s109 = scalar_lea.vmem [#allocation2], 24
    %110 = vst.msk [vmem:[%s109 + $0x2] sm:$0xff] %vm27, %v93
    %111 = vst.msk [vmem:[%s109 + $0xa] sm:$0xff] %vm27, %v94
    %v112 = vld [vmem:[#allocation2] sm:$0xff]
    %v113 = vld [vmem:[#allocation2 + $0x8] sm:$0xff]
    %v114 = vld [vmem:[#allocation2 + $0x10] sm:$0xff]
    %v115 = vld [vmem:[#allocation2 + $0x18] sm:$0xff]
    %v116 = vld [vmem:[#allocation2 + $0x20] sm:$0xff]
    %v117 = vld [vmem:[#allocation2 + $0x28] sm:$0xff]
    %v118 = vld [vmem:[%s1] sm:$0xff]
    %v119 = vld [vmem:[%s1 + $0x8] sm:$0xff]
    %v120 = vld [vmem:[%s1 + $0x10] sm:$0xff]
    %v121 = vld [vmem:[%s1 + $0x18] sm:$0xff]
    %v123 = vsel %vm27, %v112, 0
    %v126 = vsel %vm27, %v113, 0
    %v129 = vsel %vm27, %v114, 0
    %v132 = vsel %vm27, %v115, 0
    %v135 = vsel %vm27, %v116, 0
    %v138 = vsel %vm27, %v117, 0
    %140 = vmatprep.subr.mxu0 0.0
    %141 = vmatpush1.msra.mxu0 0.0
    %142 = vmatprep.subr.mxu0 0.0
    %143 = vmatpush1.msra.mxu0 0.0
    %144 = vmatprep.subr.mxu0 0.0
    %145 = vmatpush1.msra.mxu0 0.0
    %146 = vmatprep.subr.mxu0 0.0
    %147 = vmatpush1.msra.mxu0 0.0
    %148 = vmatprep.subr.mxu0 0.0
    %149 = vmatpush1.msra.mxu0 0.0
    %150 = vmatprep.subr.mxu0 0.0
    %151 = vmatpush1.msra.mxu0 0.0
    %152 = vmatprep.subr.mxu0 0.0
    %153 = vmatpush1.msra.mxu0 0.0
    %154 = vmatprep.subr.mxu0 0.0
    %155 = vmatpush1.msra.mxu0 0.0
    %156 = vmatprep.subr.mxu0 0.0
    %157 = vmatpush1.msra.mxu0 0.0
    %158 = vmatprep.subr.mxu0 0.0
    %159 = vmatpush1.msra.mxu0 0.0
    %160 = vmatprep.subr.mxu0 0.0
    %161 = vmatpush1.msra.mxu0 0.0
    %162 = vmatprep.subr.mxu0 0.0
    %163 = vmatpush1.msra.mxu0 0.0
    %164 = vmatprep.subr.mxu0 0.0
    %165 = vmatpush1.msra.mxu0 %v121
    %166 = vmatprep.subr.mxu0 0.0
    %167 = vmatpush1.msra.mxu0 %v120
    %168 = vmatprep.subr.mxu0 0.0
    %169 = vmatpush1.msra.mxu0 %v119
    %170 = vmatprep.subr.mxu0 0.0
    %171 = vmatpush1.msra.mxu0 %v118
    %172 = vmatprep.subr.mxu0 0.0
    %173 = vmatpush2.msra.mxu0 0.0
    %174 = vmatprep.subr.mxu0 0.0
    %175 = vmatpush2.msra.mxu0 0.0
    %176 = vmatprep.subr.mxu0 0.0
    %177 = vmatpush2.msra.mxu0 0.0
    %178 = vmatprep.subr.mxu0 0.0
    %179 = vmatpush2.msra.mxu0 0.0
    %180 = vmatprep.subr.mxu0 0.0
    %181 = vmatpush2.msra.mxu0 0.0
    %182 = vmatprep.subr.mxu0 0.0
    %183 = vmatpush2.msra.mxu0 0.0
    %184 = vmatprep.subr.mxu0 0.0
    %185 = vmatpush2.msra.mxu0 0.0
    %186 = vmatprep.subr.mxu0 0.0
    %187 = vmatpush2.msra.mxu0 0.0
    %188 = vmatprep.subr.mxu0 0.0
    %189 = vmatpush2.msra.mxu0 0.0
    %190 = vmatprep.subr.mxu0 0.0
    %191 = vmatpush2.msra.mxu0 0.0
    %192 = vmatprep.subr.mxu0 0.0
    %193 = vmatpush2.msra.mxu0 0.0
    %194 = vmatprep.subr.mxu0 0.0
    %195 = vmatpush2.msra.mxu0 0.0
    %196 = vmatprep.subr.mxu0 0.0
    %197 = vmatpush2.msra.mxu0 0.0
    %198 = vmatprep.subr.mxu0 0.0
    %199 = vmatpush2.msra.mxu0 0.0
    %200 = vmatprep.subr.mxu0 0.0
    %201 = vmatpush2.msra.mxu0 0.0
    %202 = vmatprep.subr.mxu0 0.0
    %203 = vmatpush2.msra.mxu0 0.0
    %204 = vmatprep.mubr.f32.mxu0 0.0
    %205 = vmatmul.mubr.f32.gmra.mxu0 %v123
    %v206 = vpop.f32.mrf.mxu0
    %v207 = vadd.f32 0.0, %v206
    %v208 = vpop.f32.mrf.mxu0
    %209 = vmatprep.mubr.f32.mxu0 0.0
    %210 = vmatmul.mubr.f32.gmra.mxu0 %v126
    %v211 = vpop.f32.mrf.mxu0
    %v212 = vadd.f32 0.0, %v211
    %v213 = vpop.f32.mrf.mxu0
    %214 = vmatprep.mubr.f32.mxu0 0.0
    %215 = vmatmul.mubr.f32.gmra.mxu0 %v129
    %v216 = vpop.f32.mrf.mxu0
    %v217 = vadd.f32 0.0, %v216
    %v218 = vpop.f32.mrf.mxu0
    %219 = vmatprep.mubr.f32.mxu0 0.0
    %220 = vmatmul.mubr.f32.gmra.mxu0 %v132
    %v221 = vpop.f32.mrf.mxu0
    %v222 = vadd.f32 0.0, %v221
    %v223 = vpop.f32.mrf.mxu0
    %224 = vmatprep.mubr.f32.mxu0 0.0
    %225 = vmatmul.mubr.f32.gmra.mxu0 %v135
    %v226 = vpop.f32.mrf.mxu0
    %v227 = vadd.f32 0.0, %v226
    %v228 = vpop.f32.mrf.mxu0
    %229 = vmatprep.mubr.f32.mxu0 0.0
    %230 = vmatmul.mubr.f32.gmra.mxu0 %v138
    %v231 = vpop.f32.mrf.mxu0
    %v232 = vadd.f32 0.0, %v231
    %v233 = vpop.f32.mrf.mxu0
    %234 = vdwg.mxu0
    %vm241 = vcmask 1046528
    %v242 = vrot.slane %v207, 1
    %v243 = vrot.slane %v212, 1
    %v244 = vsel %vm241, %v242, %v243
    %v245 = vrot.slane %v217, 1
    %v246 = vsel %vm241, %v243, %v245
    %v247 = vrot.slane %v222, 1
    %v248 = vrot.slane %v227, 1
    %v249 = vsel %vm241, %v247, %v248
    %v250 = vrot.slane %v232, 1
    %v251 = vsel %vm241, %v248, %v250
    %252 = vrot.lane.b32.xlu0 %v244, 104
    %v253 = vpop.permute.xlu0 %252
    %254 = vrot.lane.b32.xlu0 %v246, 104
    %v255 = vpop.permute.xlu0 %254
    %256 = vrot.lane.b32.xlu0 %v249, 104
    %v257 = vpop.permute.xlu0 %256
    %258 = vrot.lane.b32.xlu0 %v251, 104
    %v259 = vpop.permute.xlu0 %258
    %v264 = vadd.f32 %v207, %v253
    %v265 = vadd.f32 %v212, %v255
    %v266 = vadd.f32 %v222, %v257
    %v267 = vadd.f32 %v227, %v259
    %vm268 = vcmask 1045504
    %v269 = vrot.slane %v207, 2
    %v270 = vrot.slane %v212, 2
    %v271 = vsel %vm268, %v269, %v270
    %v272 = vrot.slane %v217, 2
    %v273 = vsel %vm268, %v270, %v272
    %v274 = vrot.slane %v222, 2
    %v275 = vrot.slane %v227, 2
    %v276 = vsel %vm268, %v274, %v275
    %v277 = vrot.slane %v232, 2
    %v278 = vsel %vm268, %v275, %v277
    %279 = vrot.lane.b32.xlu0 %v271, 80
    %v280 = vpop.permute.xlu0 %279
    %281 = vrot.lane.b32.xlu0 %v273, 80
    %v282 = vpop.permute.xlu0 %281
    %283 = vrot.lane.b32.xlu0 %v276, 80
    %v284 = vpop.permute.xlu0 %283
    %285 = vrot.lane.b32.xlu0 %v278, 80
    %v286 = vpop.permute.xlu0 %285
    %v291 = vadd.f32 %v264, %v280
    %v292 = vadd.f32 %v265, %v282
    %v293 = vadd.f32 %v266, %v284
    %v294 = vadd.f32 %v267, %v286
    %vm295 = vcmask 1044480
    %v296 = vrot.slane %v207, 3
    %v297 = vrot.slane %v212, 3
    %v298 = vsel %vm295, %v296, %v297
    %v299 = vrot.slane %v217, 3
    %v300 = vsel %vm295, %v297, %v299
    %v301 = vrot.slane %v222, 3
    %v302 = vrot.slane %v227, 3
    %v303 = vsel %vm295, %v301, %v302
    %v304 = vrot.slane %v232, 3
    %v305 = vsel %vm295, %v302, %v304
    %306 = vrot.lane.b32.xlu0 %v298, 56
    %v307 = vpop.permute.xlu0 %306
    %308 = vrot.lane.b32.xlu0 %v300, 56
    %v309 = vpop.permute.xlu0 %308
    %310 = vrot.lane.b32.xlu0 %v303, 56
    %v311 = vpop.permute.xlu0 %310
    %312 = vrot.lane.b32.xlu0 %v305, 56
    %v313 = vpop.permute.xlu0 %312
    %v318 = vadd.f32 %v291, %v307
    %v319 = vadd.f32 %v292, %v309
    %v320 = vadd.f32 %v293, %v311
    %v321 = vadd.f32 %v294, %v313
    %vm322 = vcmask 1043456
    %v323 = vrot.slane %v207, 4
    %v324 = vrot.slane %v212, 4
    %v325 = vsel %vm322, %v323, %v324
    %v326 = vrot.slane %v217, 4
    %v327 = vsel %vm322, %v324, %v326
    %v328 = vrot.slane %v222, 4
    %v329 = vrot.slane %v227, 4
    %v330 = vsel %vm322, %v328, %v329
    %v331 = vrot.slane %v232, 4
    %v332 = vsel %vm322, %v329, %v331
    %333 = vrot.lane.b32.xlu0 %v325, 32
    %v334 = vpop.permute.xlu0 %333
    %335 = vrot.lane.b32.xlu0 %v327, 32
    %v336 = vpop.permute.xlu0 %335
    %337 = vrot.lane.b32.xlu0 %v330, 32
    %v338 = vpop.permute.xlu0 %337
    %339 = vrot.lane.b32.xlu0 %v332, 32
    %v340 = vpop.permute.xlu0 %339
    %v345 = vadd.f32 %v318, %v334
    %v346 = vadd.f32 %v319, %v336
    %v347 = vadd.f32 %v320, %v338
    %v348 = vadd.f32 %v321, %v340
    %vm349 = vcmask 195584
    %v350 = vsel %vm349, %v345, 0.0
    %v351 = vsel %vm349, %v346, 0.0
    %v352 = vadd.f32 %v350, %v351
    %v353 = vsel %vm349, %v347, 0.0
    %v354 = vadd.f32 %v352, %v353
    %v355 = vsel %vm349, %v348, 0.0
    %v356 = vadd.f32 %v354, %v355
    %v357 = vrot.slane %v356, 4
    %v358 = vadd.f32 %v356, %v357
    %v359 = vrot.slane %v358, 2
    %v360 = vadd.f32 %v358, %v359
    %v361 = vrot.slane %v360, 1
    %v362 = vadd.f32 %v360, %v361
    %v363 = vmul.f32 %v362, 0.03125
    %v364 = vmul.f32 %v345, %v345
    %v365 = vmul.f32 %v346, %v346
    %v366 = vmul.f32 %v347, %v347
    %v367 = vmul.f32 %v348, %v348
    %v368 = vsel %vm349, %v364, 0.0
    %v369 = vsel %vm349, %v365, 0.0
    %v370 = vadd.f32 %v368, %v369
    %v371 = vsel %vm349, %v366, 0.0
    %v372 = vadd.f32 %v370, %v371
    %v373 = vsel %vm349, %v367, 0.0
    %v374 = vadd.f32 %v372, %v373
    %v375 = vrot.slane %v374, 4
    %v376 = vadd.f32 %v374, %v375
    %v377 = vrot.slane %v376, 2
    %v378 = vadd.f32 %v376, %v377
    %v379 = vrot.slane %v378, 1
    %v380 = vadd.f32 %v378, %v379
    %v381 = vmul.f32 %v380, 0.03125
    %v382 = vmul.f32 %v363, %v363
    %v383 = vsub.f32 %v381, %v382
    %v384 = vsub.f32 %v345, %v363
    %v385 = vsub.f32 %v346, %v363
    %v386 = vsub.f32 %v347, %v363
    %v387 = vsub.f32 %v348, %v363
    %v388 = vadd.f32 %v383, 1e-05
    %v389 = vrsqrt.pop %v388
    %v390 = vld [vmem:[%s2] sm:$0x1]
    %v391 = vmul.f32 %v389, %v390
    %v392 = vlaneseq
    %v393 = vshrl.u32 %v392, 7
    %v394 = vsub.s32 0, %v393
    %v395 = vrot.slane %v391, %v394
    %v396 = vmul.f32 %v384, %v395
    %v397 = vmul.f32 %v385, %v395
    %v398 = vmul.f32 %v386, %v395
    %v399 = vmul.f32 %v387, %v395
    %v400 = vld [vmem:[%s3] sm:$0x1]
    %v402 = vlaneseq
    %v403 = vshrl.u32 %v402, 7
    %v404 = vsub.s32 0, %v403
    %v405 = vrot.slane %v400, %v404
    %v407 = vadd.f32 %v396, %v405
    %v408 = vadd.f32 %v397, %v405
    %v409 = vadd.f32 %v398, %v405
    %v410 = vadd.f32 %v399, %v405
    %vm411 = vcmp.ge.f32.partialorder %v407, 0.0
    %vm412 = vcmp.ge.f32.partialorder %v408, 0.0
    %vm413 = vcmp.ge.f32.partialorder %v409, 0.0
    %vm414 = vcmp.ge.f32.partialorder %v410, 0.0
    %v415 = vmul.f32 %v407, 0.01
    %v416 = vmul.f32 %v408, 0.01
    %v417 = vmul.f32 %v409, 0.01
    %v418 = vmul.f32 %v410, 0.01
    %v419 = vsel %vm411, %v407, %v415
    %v420 = vsel %vm412, %v408, %v416
    %v421 = vsel %vm413, %v409, %v417
    %v422 = vsel %vm414, %v410, %v418
    %423 = vst.msk [vmem:[#allocation3] sm:$0xff] %vm349, 0.0
    %424 = vst.msk [vmem:[#allocation3 + $0x8] sm:$0xff] %vm349, 0.0
    %425 = vst.msk [vmem:[#allocation3 + $0x10] sm:$0xff] %vm349, 0.0
    %426 = vst.msk [vmem:[#allocation3 + $0x18] sm:$0xff] %vm349, 0.0
    %427 = vst.msk [vmem:[#allocation3 + $0x20] sm:$0xff] %vm349, 0.0
    %428 = vst.msk [vmem:[#allocation3 + $0x28] sm:$0xff] %vm349, 0.0
    %429 = vst.msk [vmem:[#allocation3 + $0x1] sm:$0xff] %vm349, %v419
    %430 = vst.msk [vmem:[#allocation3 + $0x9] sm:$0xff] %vm349, %v420
    %431 = vst.msk [vmem:[#allocation3 + $0x19] sm:$0xff] %vm349, %v421
    %432 = vst.msk [vmem:[#allocation3 + $0x21] sm:$0xff] %vm349, %v422
    %v433 = vld [vmem:[#allocation3] sm:$0xff]
    %v434 = vld [vmem:[#allocation3 + $0x8] sm:$0xff]
    %v435 = vld [vmem:[#allocation3 + $0x10] sm:$0xff]
    %v436 = vld [vmem:[#allocation3 + $0x18] sm:$0xff]
    %v437 = vld [vmem:[#allocation3 + $0x20] sm:$0xff]
    %v438 = vld [vmem:[#allocation3 + $0x28] sm:$0xff]
    %v439 = vld [vmem:[%s4] sm:$0xff]
    %v440 = vld [vmem:[%s4 + $0x8] sm:$0xff]
    %v441 = vld [vmem:[%s4 + $0x10] sm:$0xff]
    %v443 = vsel %vm349, %v433, 0
    %v446 = vsel %vm349, %v434, 0
    %v449 = vsel %vm349, %v435, 0
    %v452 = vsel %vm349, %v436, 0
    %v455 = vsel %vm349, %v437, 0
    %v458 = vsel %vm349, %v438, 0
    %460 = vmatprep.subr.mxu0 0.0
    %461 = vmatpush1.msra.mxu0 0.0
    %462 = vmatprep.subr.mxu0 0.0
    %463 = vmatpush1.msra.mxu0 0.0
    %464 = vmatprep.subr.mxu0 0.0
    %465 = vmatpush1.msra.mxu0 0.0
    %466 = vmatprep.subr.mxu0 0.0
    %467 = vmatpush1.msra.mxu0 0.0
    %468 = vmatprep.subr.mxu0 0.0
    %469 = vmatpush1.msra.mxu0 0.0
    %470 = vmatprep.subr.mxu0 0.0
    %471 = vmatpush1.msra.mxu0 0.0
    %472 = vmatprep.subr.mxu0 0.0
    %473 = vmatpush1.msra.mxu0 0.0
    %474 = vmatprep.subr.mxu0 0.0
    %475 = vmatpush1.msra.mxu0 0.0
    %476 = vmatprep.subr.mxu0 0.0
    %477 = vmatpush1.msra.mxu0 0.0
    %478 = vmatprep.subr.mxu0 0.0
    %479 = vmatpush1.msra.mxu0 0.0
    %480 = vmatprep.subr.mxu0 0.0
    %481 = vmatpush1.msra.mxu0 0.0
    %482 = vmatprep.subr.mxu0 0.0
    %483 = vmatpush1.msra.mxu0 0.0
    %484 = vmatprep.subr.mxu0 0.0
    %485 = vmatpush1.msra.mxu0 0.0
    %486 = vmatprep.subr.mxu0 0.0
    %487 = vmatpush1.msra.mxu0 %v441
    %488 = vmatprep.subr.mxu0 0.0
    %489 = vmatpush1.msra.mxu0 %v440
    %490 = vmatprep.subr.mxu0 0.0
    %491 = vmatpush1.msra.mxu0 %v439
    %492 = vmatprep.subr.mxu0 0.0
    %493 = vmatpush2.msra.mxu0 0.0
    %494 = vmatprep.subr.mxu0 0.0
    %495 = vmatpush2.msra.mxu0 0.0
    %496 = vmatprep.subr.mxu0 0.0
    %497 = vmatpush2.msra.mxu0 0.0
    %498 = vmatprep.subr.mxu0 0.0
    %499 = vmatpush2.msra.mxu0 0.0
    %500 = vmatprep.subr.mxu0 0.0
    %501 = vmatpush2.msra.mxu0 0.0
    %502 = vmatprep.subr.mxu0 0.0
    %503 = vmatpush2.msra.mxu0 0.0
    %504 = vmatprep.subr.mxu0 0.0
    %505 = vmatpush2.msra.mxu0 0.0
    %506 = vmatprep.subr.mxu0 0.0
    %507 = vmatpush2.msra.mxu0 0.0
    %508 = vmatprep.subr.mxu0 0.0
    %509 = vmatpush2.msra.mxu0 0.0
    %510 = vmatprep.subr.mxu0 0.0
    %511 = vmatpush2.msra.mxu0 0.0
    %512 = vmatprep.subr.mxu0 0.0
    %513 = vmatpush2.msra.mxu0 0.0
    %514 = vmatprep.subr.mxu0 0.0
    %515 = vmatpush2.msra.mxu0 0.0
    %516 = vmatprep.subr.mxu0 0.0
    %517 = vmatpush2.msra.mxu0 0.0
    %518 = vmatprep.subr.mxu0 0.0
    %519 = vmatpush2.msra.mxu0 0.0
    %520 = vmatprep.subr.mxu0 0.0
    %521 = vmatpush2.msra.mxu0 0.0
    %522 = vmatprep.subr.mxu0 0.0
    %523 = vmatpush2.msra.mxu0 0.0
    %524 = vmatprep.mubr.f32.mxu0 0.0
    %525 = vmatmul.mubr.f32.gmra.mxu0 %v443
    %v526 = vpop.f32.mrf.mxu0
    %v527 = vadd.f32 0.0, %v526
    %v528 = vpop.f32.mrf.mxu0
    %529 = vmatprep.mubr.f32.mxu0 0.0
    %530 = vmatmul.mubr.f32.gmra.mxu0 %v446
    %v531 = vpop.f32.mrf.mxu0
    %v532 = vadd.f32 0.0, %v531
    %v533 = vpop.f32.mrf.mxu0
    %534 = vmatprep.mubr.f32.mxu0 0.0
    %535 = vmatmul.mubr.f32.gmra.mxu0 %v449
    %v536 = vpop.f32.mrf.mxu0
    %v537 = vadd.f32 0.0, %v536
    %v538 = vpop.f32.mrf.mxu0
    %539 = vmatprep.mubr.f32.mxu0 0.0
    %540 = vmatmul.mubr.f32.gmra.mxu0 %v452
    %v541 = vpop.f32.mrf.mxu0
    %v542 = vadd.f32 0.0, %v541
    %v543 = vpop.f32.mrf.mxu0
    %544 = vmatprep.mubr.f32.mxu0 0.0
    %545 = vmatmul.mubr.f32.gmra.mxu0 %v455
    %v546 = vpop.f32.mrf.mxu0
    %v547 = vadd.f32 0.0, %v546
    %v548 = vpop.f32.mrf.mxu0
    %549 = vmatprep.mubr.f32.mxu0 0.0
    %550 = vmatmul.mubr.f32.gmra.mxu0 %v458
    %v551 = vpop.f32.mrf.mxu0
    %v552 = vadd.f32 0.0, %v551
    %v553 = vpop.f32.mrf.mxu0
    %554 = vdwg.mxu0
    %v561 = vrot.slane %v527, 1
    %v562 = vrot.slane %v532, 1
    %v563 = vsel %vm241, %v561, %v562
    %v564 = vrot.slane %v537, 1
    %v565 = vsel %vm241, %v562, %v564
    %v566 = vrot.slane %v542, 1
    %v567 = vrot.slane %v547, 1
    %v568 = vsel %vm241, %v566, %v567
    %v569 = vrot.slane %v552, 1
    %v570 = vsel %vm241, %v567, %v569
    %571 = vrot.lane.b32.xlu0 %v563, 120
    %v572 = vpop.permute.xlu0 %571
    %573 = vrot.lane.b32.xlu0 %v565, 120
    %v574 = vpop.permute.xlu0 %573
    %575 = vrot.lane.b32.xlu0 %v568, 120
    %v576 = vpop.permute.xlu0 %575
    %577 = vrot.lane.b32.xlu0 %v570, 120
    %v578 = vpop.permute.xlu0 %577
    %v583 = vadd.f32 %v527, %v572
    %v584 = vadd.f32 %v532, %v574
    %v585 = vadd.f32 %v542, %v576
    %v586 = vadd.f32 %v547, %v578
    %v587 = vrot.slane %v527, 2
    %v588 = vrot.slane %v532, 2
    %v589 = vsel %vm268, %v587, %v588
    %v590 = vrot.slane %v537, 2
    %v591 = vsel %vm268, %v588, %v590
    %v592 = vrot.slane %v542, 2
    %v593 = vrot.slane %v547, 2
    %v594 = vsel %vm268, %v592, %v593
    %v595 = vrot.slane %v552, 2
    %v596 = vsel %vm268, %v593, %v595
    %597 = vrot.lane.b32.xlu0 %v589, 112
    %v598 = vpop.permute.xlu0 %597
    %599 = vrot.lane.b32.xlu0 %v591, 112
    %v600 = vpop.permute.xlu0 %599
    %601 = vrot.lane.b32.xlu0 %v594, 112
    %v602 = vpop.permute.xlu0 %601
    %603 = vrot.lane.b32.xlu0 %v596, 112
    %v604 = vpop.permute.xlu0 %603
    %v609 = vadd.f32 %v583, %v598
    %v610 = vadd.f32 %v584, %v600
    %v611 = vadd.f32 %v585, %v602
    %v612 = vadd.f32 %v586, %v604
    %vm613 = vcmask 64512
    %v614 = vsel %vm613, %v609, 0.0
    %v615 = vsel %vm613, %v610, 0.0
    %v616 = vadd.f32 %v614, %v615
    %v617 = vsel %vm613, %v611, 0.0
    %v618 = vadd.f32 %v616, %v617
    %v619 = vsel %vm613, %v612, 0.0
    %v620 = vadd.f32 %v618, %v619
    %v621 = vrot.slane %v620, 4
    %v622 = vadd.f32 %v620, %v621
    %v623 = vrot.slane %v622, 2
    %v624 = vadd.f32 %v622, %v623
    %v625 = vrot.slane %v624, 1
    %v626 = vadd.f32 %v624, %v625
    %v627 = vmul.f32 %v626, 0.03125
    %v628 = vmul.f32 %v609, %v609
    %v629 = vmul.f32 %v610, %v610
    %v630 = vmul.f32 %v611, %v611
    %v631 = vmul.f32 %v612, %v612
    %v632 = vsel %vm613, %v628, 0.0
    %v633 = vsel %vm613, %v629, 0.0
    %v634 = vadd.f32 %v632, %v633
    %v635 = vsel %vm613, %v630, 0.0
    %v636 = vadd.f32 %v634, %v635
    %v637 = vsel %vm613, %v631, 0.0
    %v638 = vadd.f32 %v636, %v637
    %v639 = vrot.slane %v638, 4
    %v640 = vadd.f32 %v638, %v639
    %v641 = vrot.slane %v640, 2
    %v642 = vadd.f32 %v640, %v641
    %v643 = vrot.slane %v642, 1
    %v644 = vadd.f32 %v642, %v643
    %v645 = vmul.f32 %v644, 0.03125
    %v646 = vmul.f32 %v627, %v627
    %v647 = vsub.f32 %v645, %v646
    %v648 = vsub.f32 %v609, %v627
    %v649 = vsub.f32 %v610, %v627
    %v650 = vsub.f32 %v611, %v627
    %v651 = vsub.f32 %v612, %v627
    %v652 = vadd.f32 %v647, 1e-05
    %v653 = vrsqrt.pop %v652
    %v654 = vld [vmem:[%s5] sm:$0x1]
    %v655 = vmul.f32 %v653, %v654
    %v656 = vlaneseq
    %v657 = vshrl.u32 %v656, 7
    %v658 = vsub.s32 0, %v657
    %v659 = vrot.slane %v655, %v658
    %v660 = vmul.f32 %v648, %v659
    %v661 = vmul.f32 %v649, %v659
    %v662 = vmul.f32 %v650, %v659
    %v663 = vmul.f32 %v651, %v659
    %v664 = vld [vmem:[%s6] sm:$0x1]
    %v666 = vlaneseq
    %v667 = vshrl.u32 %v666, 7
    %v668 = vsub.s32 0, %v667
    %v669 = vrot.slane %v664, %v668
    %v671 = vadd.f32 %v660, %v669
    %v672 = vadd.f32 %v661, %v669
    %v673 = vadd.f32 %v662, %v669
    %v674 = vadd.f32 %v663, %v669
    %vm675 = vcmp.ge.f32.partialorder %v671, 0.0
    %vm676 = vcmp.ge.f32.partialorder %v672, 0.0
    %vm677 = vcmp.ge.f32.partialorder %v673, 0.0
    %vm678 = vcmp.ge.f32.partialorder %v674, 0.0
    %v679 = vmul.f32 %v671, 0.01
    %v680 = vmul.f32 %v672, 0.01
    %v681 = vmul.f32 %v673, 0.01
    %v682 = vmul.f32 %v674, 0.01
    %v683 = vsel %vm675, %v671, %v679
    %v684 = vsel %vm676, %v672, %v680
    %v685 = vsel %vm677, %v673, %v681
    %v686 = vsel %vm678, %v674, %v682
    %687 = vxpose.xlu0.b32.start [1/16] %v683, 128
    %688 = vxpose.xlu0.b32.cont [2/16] %v684, 128
    %689 = vxpose.xlu0.b32.cont [3/16] 0.0, 128
    %690 = vxpose.xlu0.b32.cont [4/16] 0.0, 128
    %691 = vxpose.xlu0.b32.cont [5/16] 0.0, 128
    %692 = vxpose.xlu0.b32.cont [6/16] 0.0, 128
    %693 = vxpose.xlu0.b32.cont [7/16] 0.0, 128
    %694 = vxpose.xlu0.b32.cont [8/16] 0.0, 128
    %695 = vxpose.xlu0.b32.cont [9/16] 0.0, 128
    %696 = vxpose.xlu0.b32.cont [10/16] 0.0, 128
    %697 = vxpose.xlu0.b32.cont [11/16] 0.0, 128
    %698 = vxpose.xlu0.b32.cont [12/16] 0.0, 128
    %699 = vxpose.xlu0.b32.cont [13/16] 0.0, 128
    %700 = vxpose.xlu0.b32.cont [14/16] 0.0, 128
    %701 = vxpose.xlu0.b32.cont [15/16] 0.0, 128
    %702 = vxpose.xlu0.b32.end [16/16] 0.0, 128
    %v703 = vpop.trf.xlu0
    %v704 = vpop.trf.xlu0
    %v705 = vpop.trf.xlu0
    %v706 = vpop.trf.xlu0
    %v707 = vpop.trf.xlu0
    %v708 = vpop.trf.xlu0
    %v709 = vpop.trf.xlu0
    %v710 = vpop.trf.xlu0
    %v711 = vpop.trf.xlu0
    %v712 = vpop.trf.xlu0
    %v713 = vpop.trf.xlu0
    %v714 = vpop.trf.xlu0
    %v715 = vpop.trf.xlu0
    %v716 = vpop.trf.xlu0
    %v717 = vpop.trf.xlu0
    %v718 = vpop.trf.xlu0
    %vm719 = vcmask 130048
    %720 = vst.msk [vmem:[#allocation4] sm:$0xff] %vm719, %v703
    %721 = vxpose.xlu0.b32.start [1/16] %v685, 128
    %722 = vxpose.xlu0.b32.cont [2/16] %v686, 128
    %723 = vxpose.xlu0.b32.cont [3/16] 0.0, 128
    %724 = vxpose.xlu0.b32.cont [4/16] 0.0, 128
    %725 = vxpose.xlu0.b32.cont [5/16] 0.0, 128
    %726 = vxpose.xlu0.b32.cont [6/16] 0.0, 128
    %727 = vxpose.xlu0.b32.cont [7/16] 0.0, 128
    %728 = vxpose.xlu0.b32.cont [8/16] 0.0, 128
    %729 = vxpose.xlu0.b32.cont [9/16] 0.0, 128
    %730 = vxpose.xlu0.b32.cont [10/16] 0.0, 128
    %731 = vxpose.xlu0.b32.cont [11/16] 0.0, 128
    %732 = vxpose.xlu0.b32.cont [12/16] 0.0, 128
    %733 = vxpose.xlu0.b32.cont [13/16] 0.0, 128
    %734 = vxpose.xlu0.b32.cont [14/16] 0.0, 128
    %735 = vxpose.xlu0.b32.cont [15/16] 0.0, 128
    %736 = vxpose.xlu0.b32.end [16/16] 0.0, 128
    %v737 = vpop.trf.xlu0
    %v738 = vpop.trf.xlu0
    %v739 = vpop.trf.xlu0
    %v740 = vpop.trf.xlu0
    %v741 = vpop.trf.xlu0
    %v742 = vpop.trf.xlu0
    %v743 = vpop.trf.xlu0
    %v744 = vpop.trf.xlu0
    %v745 = vpop.trf.xlu0
    %v746 = vpop.trf.xlu0
    %v747 = vpop.trf.xlu0
    %v748 = vpop.trf.xlu0
    %v749 = vpop.trf.xlu0
    %v750 = vpop.trf.xlu0
    %v751 = vpop.trf.xlu0
    %v752 = vpop.trf.xlu0
    %s753 = scalar_lea.vmem [#allocation4], 8
    %754 = vst.msk [vmem:[%s753] sm:$0xff] %vm719, %v737
    // Predicated region
    $region30: #{baseconv_forward.1} parent=1 // pred_check
      _
    $region31: #{baseconv_forward.1} parent=1 // pred_check_branch
      %756 = sbr.rel (0) target = $region33
    $region32: #{baseconv_forward.1} parent=1 // pred_region
      %s758 = ssub.s32 256, 256
      %759 = vsyncadd [#allocation5], %s758
      %s760 = sshll.u32 [#allocation4], 4
      %s761 = int_to_ptr.vmem [resolvable:$true] %s760
      %766 = dma.vmem_to_hbm [thread:$0]  %s761, 256, %s7, [#allocation5], 128, 128, 8
    $region33: #{baseconv_forward.1} parent=1 // pred_fallthru
      _
    // Predicated region
    $region34: #{baseconv_forward.1} parent=1 // pred_check
      _
    $region35: #{baseconv_forward.1} parent=1 // pred_check_branch
      %768 = sbr.rel (0) target = $region37
    $region36: #{baseconv_forward.1} parent=1 // pred_region
      %769 = dma.done [#allocation5], 256
    $region37: #{baseconv_forward.1} parent=1 // pred_fallthru
      _
    %770 = vsyncpa [#allocation5], 1

</llo_original>
